<compile_context>
chip_gen: v6e
topology: v6e:2x2x1
jax: 0.10.0
libtpu: 0.0.40
codegen_flags: <defaults>
</compile_context>

<pallas_src>
import functools

import jax
import jax.numpy as jnp
from jax.experimental import pallas as pl
from jax.experimental.pallas import tpu as pltpu

IN_FEATURES = 40          # opt['in_features']
EMBED_CNT   = 26          # opt['embed_cnt']
EMBED_DIM   = 8           # opt['embed_dim']
LAYERS      = (32, 32, 9) # opt['layers'] (last layer > 1 -> .squeeze() is a no-op)
MONTHLY_IDX = 28
REST_DIM    = IN_FEATURES - EMBED_CNT            # 14
MLP_IN      = REST_DIM + EMBED_DIM               # 22
LANE        = 128


def _round_up(n, m):
    return ((n + m - 1) // m) * m


def mlp_embed_sum_res_kernel(xt_ref, w1_ref, b1_ref, w2_ref, b2_ref,
                             w3_ref, b3_ref, ot_ref, *, compute_dtype):
    # Batch-on-lanes layout: xt is (IN_FEATURES, tb); every activation below is
    # (features_on_sublanes, batch_on_lanes) -> all vregs are 128-lane dense.
    xt = xt_ref[...]                                          # (40, tb)  f32
    monthly = xt[MONTHLY_IDX:MONTHLY_IDX + 1, :]              # (1, tb)   f32

    # Linear1 with the embedding mix pre-folded into W1_eff (weights are (out, in)).
    h = jnp.dot(w1_ref[...], xt.astype(compute_dtype),
                preferred_element_type=jnp.float32) + b1_ref[...]     # (32, tb)
    h = jnp.maximum(h, 0.0)

    h = jnp.dot(w2_ref[...], h.astype(compute_dtype),
                preferred_element_type=jnp.float32) + b2_ref[...]     # (32, tb)
    h = jnp.maximum(h, 0.0)

    y = jnp.dot(w3_ref[...], h.astype(compute_dtype),
                preferred_element_type=jnp.float32) + b3_ref[...]     # (9, tb)

    # relu(y) + monthly_sum : (1, tb) sublane-broadcast over the 9 output rows.
    ot_ref[...] = jnp.maximum(y, 0.0) + monthly


def mlp_embed_sum_res(x, params, *, block_b=8192, compute_dtype=jnp.float32):
    """x: (B, IN_FEATURES) f32.  params: embed, w1a, w1b, b1, w2, b2, w3, b3."""
    B = x.shape[0]
    out_dim = LAYERS[-1]

    # Fold embedding into Linear1:
    #   z @ W1 = x[:, :EMBED_CNT] @ (E @ W1b) + x[:, EMBED_CNT:] @ W1a
    #          = x @ concat([E @ W1b, W1a], axis=0)
    w1_eff = jnp.concatenate(
        [params['embed'] @ params['w1b'], params['w1a']], axis=0)      # (40, 32)

    # Weights as (out, in); optional bf16 for the MXU.  Biases stay f32, (out, 1).
    w1t = w1_eff.T.astype(compute_dtype)                               # (32, 40)
    w2t = params['w2'].T.astype(compute_dtype)                         # (32, 32)
    w3t = params['w3'].T.astype(compute_dtype)                         # (9, 32)
    b1t = jnp.reshape(params['b1'], (-1, 1)).astype(jnp.float32)       # (32, 1)
    b2t = jnp.reshape(params['b2'], (-1, 1)).astype(jnp.float32)       # (32, 1)
    b3t = jnp.reshape(params['b3'], (-1, 1)).astype(jnp.float32)       # (9, 1)

    # Batch-on-lanes tiling: tiles are multiples of the 128-lane width; force >= 2
    # grid steps whenever there are >= 2 lane chunks so v7x megacore splits the work.
    n_chunks = pl.cdiv(B, LANE)
    max_chunks_per_tile = max(1, block_b // LANE)
    min_steps = 2 if n_chunks >= 2 else 1
    steps = max(min_steps, pl.cdiv(n_chunks, max_chunks_per_tile))
    tb = pl.cdiv(n_chunks, steps) * LANE
    b_pad = _round_up(B, tb)
    grid = (b_pad // tb,)

    # Transpose (layout plumbing); padding is fused into this same copy.
    xt = x.T                                                           # (40, B)
    if b_pad != B:
        xt = jnp.pad(xt, ((0, 0), (0, b_pad - B)))                     # (40, b_pad)

    def const_spec(arr):
        return pl.BlockSpec(arr.shape, lambda i: (0, 0))

    kernel = functools.partial(mlp_embed_sum_res_kernel, compute_dtype=compute_dtype)

    out_t = pl.pallas_call(
        kernel,
        out_shape=jax.ShapeDtypeStruct((out_dim, b_pad), jnp.float32),
        grid=grid,
        in_specs=[
            pl.BlockSpec((IN_FEATURES, tb), lambda i: (0, i)),  # x^T: tiled over batch lanes
            const_spec(w1t),                                    # weights stay VMEM-resident
            const_spec(b1t),
            const_spec(w2t),
            const_spec(b2t),
            const_spec(w3t),
            const_spec(b3t),
        ],
        out_specs=pl.BlockSpec((out_dim, tb), lambda i: (0, i)),
        compiler_params=pltpu.CompilerParams(
            dimension_semantics=("parallel",)),
    )(xt, w1t, b1t, w2t, b2t, w3t, b3t)

    # Untranspose + drop padded batch columns (tiny (9, B) copy).
    return out_t[:, :B].T


def reference(x, params):
    """Pure-JAX reference mirroring the PyTorch forward."""
    monthly = x[:, MONTHLY_IDX:MONTHLY_IDX + 1]
    emb = x[:, :EMBED_CNT] @ params['embed']
    z = jnp.concatenate([x[:, EMBED_CNT:], emb], axis=-1)
    w1 = jnp.concatenate([params['w1a'], params['w1b']], axis=0)
    h = jnp.maximum(z @ w1 + params['b1'], 0.0)
    h = jnp.maximum(h @ params['w2'] + params['b2'], 0.0)
    y = h @ params['w3'] + params['b3']
    # y.squeeze() is a no-op here (B > 1, last layer > 1)
    return jnp.maximum(y, 0.0) + monthly


if __name__ == "__main__":
    key = jax.random.PRNGKey(0)
    keys = jax.random.split(key, 8)
    # B = 300 -> 3 lane chunks -> tb = 256, grid = (2,), 212 padded batch columns:
    # exercises the multi-step parallel grid and the fused transpose+pad path.
    B = 300

    x = jax.random.normal(keys[0], (B, IN_FEATURES), jnp.float32)

    def linear_init(k, fin, fout):
        kw, kb = jax.random.split(k)
        w = jax.random.normal(kw, (fin, fout), jnp.float32) / jnp.sqrt(fin)
        b = jax.random.normal(kb, (1, fout), jnp.float32) * 0.1
        return w, b

    embed = jax.random.normal(keys[1], (EMBED_CNT, EMBED_DIM), jnp.float32)
    w1, b1 = linear_init(keys[2], MLP_IN, LAYERS[0])
    w2, b2 = linear_init(keys[3], LAYERS[0], LAYERS[1])
    w3, b3 = linear_init(keys[4], LAYERS[1], LAYERS[2])

    params = dict(
        embed=embed,
        w1a=w1[:REST_DIM],   # rows multiplying x[:, embed_cnt:]
        w1b=w1[REST_DIM:],   # rows multiplying the embedding output
        b1=b1, w2=w2, b2=b2, w3=w3, b3=b3,
    )

    ref = reference(x, params)

    # f32 path (default): must match the reference tightly.
    out = mlp_embed_sum_res(x, params)
    jax.block_until_ready(out)
    assert out.shape == (B, LAYERS[-1])
    assert jnp.allclose(out, ref, atol=1e-5, rtol=1e-5), "f32 mismatch vs reference"

    # Optional bf16-MXU path (v6e/v7x): accuracy-gated, so a loose tolerance.
    out_bf16 = mlp_embed_sum_res(x, params, compute_dtype=jnp.bfloat16)
    jax.block_until_ready(out_bf16)
    assert out_bf16.shape == (B, LAYERS[-1])
    assert jnp.allclose(out_bf16, ref, atol=0.25, rtol=0.05), "bf16 mismatch vs reference"

    print("KERNEL_OK")
</pallas_src>

<mosaic_0001>
module attributes {stable_mosaic.version = 11 : i64} {
  func.func @mlp_embed_sum_res_kernel(%arg0: i32, %arg1: memref<40x256xf32, #tpu.memory_space<vmem>>, %arg2: memref<32x40xf32, #tpu.memory_space<vmem>>, %arg3: memref<32x1xf32, #tpu.memory_space<vmem>>, %arg4: memref<32x32xf32, #tpu.memory_space<vmem>>, %arg5: memref<32x1xf32, #tpu.memory_space<vmem>>, %arg6: memref<9x32xf32, #tpu.memory_space<vmem>>, %arg7: memref<9x1xf32, #tpu.memory_space<vmem>>, %arg8: memref<9x256xf32, #tpu.memory_space<vmem>>) attributes {dimension_semantics = [#tpu.dimension_semantics<parallel>], iteration_bounds = array<i64: 2>, scalar_prefetch = 0 : i64, scratch_operands = 0 : i64, tpu.core_type = #tpu.core_type<tc>, window_params = [{transform_indices = @transform_0, window_bounds = array<i64: 40, 256>}, {pipeline_mode = #tpu.pipeline_mode<synchronous>, transform_indices = @transform_1, window_bounds = array<i64: 32, 40>}, {pipeline_mode = #tpu.pipeline_mode<synchronous>, transform_indices = @transform_2, window_bounds = array<i64: 32, 1>}, {pipeline_mode = #tpu.pipeline_mode<synchronous>, transform_indices = @transform_3, window_bounds = array<i64: 32, 32>}, {pipeline_mode = #tpu.pipeline_mode<synchronous>, transform_indices = @transform_4, window_bounds = array<i64: 32, 1>}, {pipeline_mode = #tpu.pipeline_mode<synchronous>, transform_indices = @transform_5, window_bounds = array<i64: 9, 32>}, {pipeline_mode = #tpu.pipeline_mode<synchronous>, transform_indices = @transform_6, window_bounds = array<i64: 9, 1>}, {transform_indices = @transform_7, window_bounds = array<i64: 9, 256>}]} {
    %c0 = arith.constant 0 : index
    %c0_0 = arith.constant 0 : index
    %0 = vector.load %arg1[%c0, %c0_0] : memref<40x256xf32, #tpu.memory_space<vmem>>, vector<40x256xf32>
    %1 = vector.extract_strided_slice %0 {offsets = [28, 0], sizes = [1, 256], strides = [1, 1]} : vector<40x256xf32> to vector<1x256xf32>
    %c0_1 = arith.constant 0 : index
    %c0_2 = arith.constant 0 : index
    %2 = vector.load %arg2[%c0_1, %c0_2] : memref<32x40xf32, #tpu.memory_space<vmem>>, vector<32x40xf32>
    %cst = arith.constant dense<0.000000e+00> : vector<32x256xf32>
    %3 = tpu.matmul %2, %0, %cst {dimension_numbers = #tpu.dot_dimension_numbers<[1], [0], [0], [1], [0, 0, 1, 1], [], []>} : vector<32x40xf32>, vector<40x256xf32>, vector<32x256xf32> -> vector<32x256xf32>
    %c0_3 = arith.constant 0 : index
    %c0_4 = arith.constant 0 : index
    %4 = vector.load %arg3[%c0_3, %c0_4] : memref<32x1xf32, #tpu.memory_space<vmem>>, vector<32x1xf32>
    %5 = vector.broadcast %4 : vector<32x1xf32> to vector<32x256xf32>
    %6 = arith.addf %3, %5 : vector<32x256xf32>
    %cst_5 = arith.constant 0.000000e+00 : f32
    %7 = vector.broadcast %cst_5 : f32 to vector<32x256xf32>
    %8 = arith.maximumf %6, %7 : vector<32x256xf32>
    %c0_6 = arith.constant 0 : index
    %c0_7 = arith.constant 0 : index
    %9 = vector.load %arg4[%c0_6, %c0_7] : memref<32x32xf32, #tpu.memory_space<vmem>>, vector<32x32xf32>
    %cst_8 = arith.constant dense<0.000000e+00> : vector<32x256xf32>
    %10 = tpu.matmul %9, %8, %cst_8 {dimension_numbers = #tpu.dot_dimension_numbers<[1], [0], [0], [1], [0, 0, 1, 1], [], []>} : vector<32x32xf32>, vector<32x256xf32>, vector<32x256xf32> -> vector<32x256xf32>
    %c0_9 = arith.constant 0 : index
    %c0_10 = arith.constant 0 : index
    %11 = vector.load %arg5[%c0_9, %c0_10] : memref<32x1xf32, #tpu.memory_space<vmem>>, vector<32x1xf32>
    %12 = vector.broadcast %11 : vector<32x1xf32> to vector<32x256xf32>
    %13 = arith.addf %10, %12 : vector<32x256xf32>
    %cst_11 = arith.constant 0.000000e+00 : f32
    %14 = vector.broadcast %cst_11 : f32 to vector<32x256xf32>
    %15 = arith.maximumf %13, %14 : vector<32x256xf32>
    %c0_12 = arith.constant 0 : index
    %c0_13 = arith.constant 0 : index
    %16 = vector.load %arg6[%c0_12, %c0_13] : memref<9x32xf32, #tpu.memory_space<vmem>>, vector<9x32xf32>
    %cst_14 = arith.constant dense<0.000000e+00> : vector<9x256xf32>
    %17 = tpu.matmul %16, %15, %cst_14 {dimension_numbers = #tpu.dot_dimension_numbers<[1], [0], [0], [1], [0, 0, 1, 1], [], []>} : vector<9x32xf32>, vector<32x256xf32>, vector<9x256xf32> -> vector<9x256xf32>
    %c0_15 = arith.constant 0 : index
    %c0_16 = arith.constant 0 : index
    %18 = vector.load %arg7[%c0_15, %c0_16] : memref<9x1xf32, #tpu.memory_space<vmem>>, vector<9x1xf32>
    %19 = vector.broadcast %18 : vector<9x1xf32> to vector<9x256xf32>
    %20 = arith.addf %17, %19 : vector<9x256xf32>
    %cst_17 = arith.constant 0.000000e+00 : f32
    %21 = vector.broadcast %cst_17 : f32 to vector<9x256xf32>
    %22 = arith.maximumf %20, %21 : vector<9x256xf32>
    %23 = vector.broadcast %1 : vector<1x256xf32> to vector<9x256xf32>
    %24 = arith.addf %22, %23 : vector<9x256xf32>
    %c0_18 = arith.constant 0 : index
    %c0_19 = arith.constant 0 : index
    %25 = vector.load %arg8[%c0_18, %c0_19] : memref<9x256xf32, #tpu.memory_space<vmem>>, vector<9x256xf32>
    tpu.vector_store %arg8[%c0_18, %c0_19], %24 {strides = array<i32>} : memref<9x256xf32, #tpu.memory_space<vmem>>, vector<9x256xf32>,
    return
  }
  func.func @transform_0(%arg0: i32) -> (i32, i32) {
    %c0_i32 = arith.constant 0 : i32
    %c0_i32_0 = arith.constant 0 : i32
    return %c0_i32, %arg0 : i32, i32
  }
  func.func @transform_1(%arg0: i32) -> (i32, i32) {
    %c0_i32 = arith.constant 0 : i32
    %c0_i32_0 = arith.constant 0 : i32
    %c0_i32_1 = arith.constant 0 : i32
    return %c0_i32, %c0_i32_0 : i32, i32
  }
  func.func @transform_2(%arg0: i32) -> (i32, i32) {
    %c0_i32 = arith.constant 0 : i32
    %c0_i32_0 = arith.constant 0 : i32
    %c0_i32_1 = arith.constant 0 : i32
    return %c0_i32, %c0_i32_0 : i32, i32
  }
  func.func @transform_3(%arg0: i32) -> (i32, i32) {
    %c0_i32 = arith.constant 0 : i32
    %c0_i32_0 = arith.constant 0 : i32
    %c0_i32_1 = arith.constant 0 : i32
    return %c0_i32, %c0_i32_0 : i32, i32
  }
  func.func @transform_4(%arg0: i32) -> (i32, i32) {
    %c0_i32 = arith.constant 0 : i32
    %c0_i32_0 = arith.constant 0 : i32
    %c0_i32_1 = arith.constant 0 : i32
    return %c0_i32, %c0_i32_0 : i32, i32
  }
  func.func @transform_5(%arg0: i32) -> (i32, i32) {
    %c0_i32 = arith.constant 0 : i32
    %c0_i32_0 = arith.constant 0 : i32
    %c0_i32_1 = arith.constant 0 : i32
    return %c0_i32, %c0_i32_0 : i32, i32
  }
  func.func @transform_6(%arg0: i32) -> (i32, i32) {
    %c0_i32 = arith.constant 0 : i32
    %c0_i32_0 = arith.constant 0 : i32
    %c0_i32_1 = arith.constant 0 : i32
    return %c0_i32, %c0_i32_0 : i32, i32
  }
  func.func @transform_7(%arg0: i32) -> (i32, i32) {
    %c0_i32 = arith.constant 0 : i32
    %c0_i32_0 = arith.constant 0 : i32
    return %c0_i32, %arg0 : i32, i32
  }
}

</mosaic_0001>

<llo_original>
// kernel: tpu_custom_call.1
$region0: #{tpu_custom_call.1}
  #allocation0 [shape = 'u32[]', space=smem, size = 0x4, offset = 0x4, fixed_abs, tag = 'smem constant byte address 0x4 - core index']
  #allocation1 [shape = 'u32[144,128]{1,0:T(1,128)}', space=vmem, size = 0x12000, scoped, tag = 'internal scratch']
  %s0 = inlined_call_operand.hbm [shape: f32[40,512], index: 0, kind: input, shape index: {}]
  %s1 = inlined_call_operand.vmem [shape: f32[32,40], index: 1, kind: input, shape index: {}]
  %s2 = inlined_call_operand.vmem [shape: f32[32,1], index: 2, kind: input, shape index: {}]
  %s3 = inlined_call_operand.vmem [shape: f32[32,32], index: 3, kind: input, shape index: {}]
  %s4 = inlined_call_operand.vmem [shape: f32[32,1], index: 4, kind: input, shape index: {}]
  %s5 = inlined_call_operand.vmem [shape: f32[9,32], index: 5, kind: input, shape index: {}]
  %s6 = inlined_call_operand.vmem [shape: f32[9,1], index: 6, kind: input, shape index: {}]
  %s7 = inlined_call_operand.hbm [shape: f32[9,512], index: 7, kind: output, shape index: {}]
  %s8 = sld [smem:[#allocation0]]
  $region65: #{tpu_custom_call.1} parent=0
    _
  %s10 = ssub.s32 1, %s8
  %s11 = scalar_select 0, %s10, %s8
  $region1: #{tpu_custom_call.1} parent=0
    #allocation2 [shape = 'u8[81920]{0}', space=vmem, size = 0x14000, scoped, tag = 'input window, operand 0']
    #allocation3 [shape = 's32[2]{0}', space=sflag, size = 0x8, scoped, tag = 'scoped memory for tpu_custom_call.1']
    #allocation4 [shape = 's32[2]{0}', space=sflag, size = 0x8, scoped, tag = 'scoped memory for tpu_custom_call.1']
    #allocation5 [shape = 'u8[32768]{0}', space=vmem, size = 0x8000, scoped, tag = 'output window, operand 0']
    %12 = vsyncpa [#allocation3], 0
    %s13 = scalar_lea.sflag [#allocation3], 1
    %14 = vsyncpa %s13, 0
    %15 = vsyncpa [#allocation4], 0
    %s16 = scalar_lea.sflag [#allocation4], 1
    %17 = vsyncpa %s16, 0
    loop: start=0, step=1, limit=4
    $region2: #{tpu_custom_call.1} parent=1 // loop_pre_header
      _
    $region3: #{tpu_custom_call.1} parent=1 // loop_header
      %s19 = sphi 0, %s23
      %p20 = scmp.ge.s32.totalorder %s19, 4
      %s29 = sphi 0, %s31
      %s32 = sphi 0, %s29
      %s33 = sphi 0, %s32
      %s49 = sphi 0, %s33
      %s53 = sphi 0, %s53
      %s55 = sphi 0, %s53
      %s56 = sphi 0, %s55
      %s70 = sphi 0, %s56
      %s74 = sphi 0, %s74
      %s76 = sphi 0, %s74
      %s77 = sphi 0, %s76
      %s91 = sphi 0, %s77
      %s95 = sphi 0, %s95
      %s97 = sphi 0, %s95
      %s98 = sphi 0, %s97
      %s112 = sphi 0, %s98
      %s116 = sphi 0, %s116
      %s118 = sphi 0, %s116
      %s119 = sphi 0, %s118
      %s133 = sphi 0, %s119
      %s137 = sphi 0, %s137
      %s139 = sphi 0, %s137
      %s140 = sphi 0, %s139
      %s154 = sphi 0, %s140
      %s158 = sphi 0, %s158
      %s160 = sphi 0, %s158
      %s161 = sphi 0, %s160
      %s175 = sphi 0, %s161
      %s181 = sphi 0, %s183
      %s184 = sphi 0, %s181
      %s185 = sphi 0, %s184
      %s201 = sphi 0, %s185
    $region4: #{tpu_custom_call.1} parent=1 // loop_header_branch
      %22 = sbr.rel (%p20) target = $region8
    $region5: #{tpu_custom_call.1} parent=1 // loop_body
      %s24 = ssub.s32 %s19, 1
      %s25 = ssub.s32 %s19, 2
      %s26 = sadd.s32 %s19, 1
      %s27 = ssub.s32 %s19, %s26
      %p28 = scmp.eq.s32.totalorder %s27, 0
      %s30 = sadd.s32 %s29, 1
      %s31 = scalar_select %p28, %s29, %s30
      %p34 = pneg %p28
      %p35 = scmp.eq.s32.totalorder %s19, 1
      %p36 = por %p34, %p35
      %p37 = scmp.ne.s32.totalorder %s29, %s32
      %p38 = scmp.eq.s32.totalorder %s19, 0
      %p39 = por %p37, %p38
      %p40 = scmp.ne.s32.totalorder %s29, %s32
      %p41 = scmp.eq.s32.totalorder %s24, 1
      %p42 = por %p40, %p41
      %p43 = scmp.ne.s32.totalorder %s32, %s33
      %p44 = scmp.eq.s32.totalorder %s24, 0
      %p45 = por %p43, %p44
      %p46 = scmp.ne.s32.totalorder %s32, %s33
      %p47 = scmp.eq.s32.totalorder %s25, 1
      %p48 = por %p46, %p47
      %p50 = scmp.ne.s32.totalorder %s33, %s49
      %p51 = scmp.eq.s32.totalorder %s25, 0
      %p52 = por %p50, %p51
      %s54 = sadd.s32 %s53, 1
      %p57 = scmp.eq.s32.totalorder %s19, 1
      %p58 = scmp.ne.s32.totalorder %s53, %s55
      %p59 = scmp.eq.s32.totalorder %s19, 0
      %p60 = por %p58, %p59
      %p61 = scmp.ne.s32.totalorder %s53, %s55
      %p62 = scmp.eq.s32.totalorder %s24, 1
      %p63 = por %p61, %p62
      %p64 = scmp.ne.s32.totalorder %s55, %s56
      %p65 = scmp.eq.s32.totalorder %s24, 0
      %p66 = por %p64, %p65
      %p67 = scmp.ne.s32.totalorder %s55, %s56
      %p68 = scmp.eq.s32.totalorder %s25, 1
      %p69 = por %p67, %p68
      %p71 = scmp.ne.s32.totalorder %s56, %s70
      %p72 = scmp.eq.s32.totalorder %s25, 0
      %p73 = por %p71, %p72
      %s75 = sadd.s32 %s74, 1
      %p78 = scmp.eq.s32.totalorder %s19, 1
      %p79 = scmp.ne.s32.totalorder %s74, %s76
      %p80 = scmp.eq.s32.totalorder %s19, 0
      %p81 = por %p79, %p80
      %p82 = scmp.ne.s32.totalorder %s74, %s76
      %p83 = scmp.eq.s32.totalorder %s24, 1
      %p84 = por %p82, %p83
      %p85 = scmp.ne.s32.totalorder %s76, %s77
      %p86 = scmp.eq.s32.totalorder %s24, 0
      %p87 = por %p85, %p86
      %p88 = scmp.ne.s32.totalorder %s76, %s77
      %p89 = scmp.eq.s32.totalorder %s25, 1
      %p90 = por %p88, %p89
      %p92 = scmp.ne.s32.totalorder %s77, %s91
      %p93 = scmp.eq.s32.totalorder %s25, 0
      %p94 = por %p92, %p93
      %s96 = sadd.s32 %s95, 1
      %p99 = scmp.eq.s32.totalorder %s19, 1
      %p100 = scmp.ne.s32.totalorder %s95, %s97
      %p101 = scmp.eq.s32.totalorder %s19, 0
      %p102 = por %p100, %p101
      %p103 = scmp.ne.s32.totalorder %s95, %s97
      %p104 = scmp.eq.s32.totalorder %s24, 1
      %p105 = por %p103, %p104
      %p106 = scmp.ne.s32.totalorder %s97, %s98
      %p107 = scmp.eq.s32.totalorder %s24, 0
      %p108 = por %p106, %p107
      %p109 = scmp.ne.s32.totalorder %s97, %s98
      %p110 = scmp.eq.s32.totalorder %s25, 1
      %p111 = por %p109, %p110
      %p113 = scmp.ne.s32.totalorder %s98, %s112
      %p114 = scmp.eq.s32.totalorder %s25, 0
      %p115 = por %p113, %p114
      %s117 = sadd.s32 %s116, 1
      %p120 = scmp.eq.s32.totalorder %s19, 1
      %p121 = scmp.ne.s32.totalorder %s116, %s118
      %p122 = scmp.eq.s32.totalorder %s19, 0
      %p123 = por %p121, %p122
      %p124 = scmp.ne.s32.totalorder %s116, %s118
      %p125 = scmp.eq.s32.totalorder %s24, 1
      %p126 = por %p124, %p125
      %p127 = scmp.ne.s32.totalorder %s118, %s119
      %p128 = scmp.eq.s32.totalorder %s24, 0
      %p129 = por %p127, %p128
      %p130 = scmp.ne.s32.totalorder %s118, %s119
      %p131 = scmp.eq.s32.totalorder %s25, 1
      %p132 = por %p130, %p131
      %p134 = scmp.ne.s32.totalorder %s119, %s133
      %p135 = scmp.eq.s32.totalorder %s25, 0
      %p136 = por %p134, %p135
      %s138 = sadd.s32 %s137, 1
      %p141 = scmp.eq.s32.totalorder %s19, 1
      %p142 = scmp.ne.s32.totalorder %s137, %s139
      %p143 = scmp.eq.s32.totalorder %s19, 0
      %p144 = por %p142, %p143
      %p145 = scmp.ne.s32.totalorder %s137, %s139
      %p146 = scmp.eq.s32.totalorder %s24, 1
      %p147 = por %p145, %p146
      %p148 = scmp.ne.s32.totalorder %s139, %s140
      %p149 = scmp.eq.s32.totalorder %s24, 0
      %p150 = por %p148, %p149
      %p151 = scmp.ne.s32.totalorder %s139, %s140
      %p152 = scmp.eq.s32.totalorder %s25, 1
      %p153 = por %p151, %p152
      %p155 = scmp.ne.s32.totalorder %s140, %s154
      %p156 = scmp.eq.s32.totalorder %s25, 0
      %p157 = por %p155, %p156
      %s159 = sadd.s32 %s158, 1
      %p162 = scmp.eq.s32.totalorder %s19, 1
      %p163 = scmp.ne.s32.totalorder %s158, %s160
      %p164 = scmp.eq.s32.totalorder %s19, 0
      %p165 = por %p163, %p164
      %p166 = scmp.ne.s32.totalorder %s158, %s160
      %p167 = scmp.eq.s32.totalorder %s24, 1
      %p168 = por %p166, %p167
      %p169 = scmp.ne.s32.totalorder %s160, %s161
      %p170 = scmp.eq.s32.totalorder %s24, 0
      %p171 = por %p169, %p170
      %p172 = scmp.ne.s32.totalorder %s160, %s161
      %p173 = scmp.eq.s32.totalorder %s25, 1
      %p174 = por %p172, %p173
      %p176 = scmp.ne.s32.totalorder %s161, %s175
      %p177 = scmp.eq.s32.totalorder %s25, 0
      %p178 = por %p176, %p177
      %s179 = ssub.s32 %s19, %s26
      %p180 = scmp.eq.s32.totalorder %s179, 0
      %s182 = sadd.s32 %s181, 1
      %s183 = scalar_select %p180, %s181, %s182
      %p186 = pneg %p180
      %p187 = scmp.eq.s32.totalorder %s19, 1
      %p188 = por %p186, %p187
      %p189 = scmp.ne.s32.totalorder %s181, %s184
      %p190 = scmp.eq.s32.totalorder %s19, 0
      %p191 = por %p189, %p190
      %p192 = scmp.ne.s32.totalorder %s181, %s184
      %p193 = scmp.eq.s32.totalorder %s24, 1
      %p194 = por %p192, %p193
      %p195 = scmp.ne.s32.totalorder %s184, %s185
      %p196 = scmp.eq.s32.totalorder %s24, 0
      %p197 = por %p195, %p196
      %p198 = scmp.ne.s32.totalorder %s184, %s185
      %p199 = scmp.eq.s32.totalorder %s25, 1
      %p200 = por %p198, %p199
      %p202 = scmp.ne.s32.totalorder %s185, %s201
      %p203 = scmp.eq.s32.totalorder %s25, 0
      %p204 = por %p202, %p203
      %p205 = scmp.le.s32.totalorder 1, %s19
      %p206 = scmp.lt.s32.totalorder %s19, 3
      %p207 = pnand %p205, %p206
      %p208 = pneg %p207
      // Predicated region
      $region9: #{tpu_custom_call.1} parent=5 // pred_check
        _
      $region10: #{tpu_custom_call.1} parent=5 // pred_check_branch
        %210 = sbr.rel (%p207) target = $region12
      $region11: #{tpu_custom_call.1} parent=5 // pred_region
        %s211 = ssub.s32 %s19, 1
        // Predicated region
        $region13: #{tpu_custom_call.1} parent=11 // pred_check
          %p212 = pneg %p66
        $region14: #{tpu_custom_call.1} parent=11 // pred_check_branch
          %214 = sbr.rel (%p212) target = $region16
        $region15: #{tpu_custom_call.1} parent=11 // pred_region
          _
        $region16: #{tpu_custom_call.1} parent=11 // pred_fallthru
          _
        // Predicated region
        $region17: #{tpu_custom_call.1} parent=11 // pred_check
          %p215 = pneg %p87
        $region18: #{tpu_custom_call.1} parent=11 // pred_check_branch
          %217 = sbr.rel (%p215) target = $region20
        $region19: #{tpu_custom_call.1} parent=11 // pred_region
          _
        $region20: #{tpu_custom_call.1} parent=11 // pred_fallthru
          _
        // Predicated region
        $region21: #{tpu_custom_call.1} parent=11 // pred_check
          %p218 = pneg %p108
        $region22: #{tpu_custom_call.1} parent=11 // pred_check_branch
          %220 = sbr.rel (%p218) target = $region24
        $region23: #{tpu_custom_call.1} parent=11 // pred_region
          _
        $region24: #{tpu_custom_call.1} parent=11 // pred_fallthru
          _
        // Predicated region
        $region25: #{tpu_custom_call.1} parent=11 // pred_check
          %p221 = pneg %p129
        $region26: #{tpu_custom_call.1} parent=11 // pred_check_branch
          %223 = sbr.rel (%p221) target = $region28
        $region27: #{tpu_custom_call.1} parent=11 // pred_region
          _
        $region28: #{tpu_custom_call.1} parent=11 // pred_fallthru
          _
        // Predicated region
        $region29: #{tpu_custom_call.1} parent=11 // pred_check
          %p224 = pneg %p150
        $region30: #{tpu_custom_call.1} parent=11 // pred_check_branch
          %226 = sbr.rel (%p224) target = $region32
        $region31: #{tpu_custom_call.1} parent=11 // pred_region
          _
        $region32: #{tpu_custom_call.1} parent=11 // pred_fallthru
          _
        // Predicated region
        $region33: #{tpu_custom_call.1} parent=11 // pred_check
          %p227 = pneg %p171
        $region34: #{tpu_custom_call.1} parent=11 // pred_check_branch
          %229 = sbr.rel (%p227) target = $region36
        $region35: #{tpu_custom_call.1} parent=11 // pred_region
          _
        $region36: #{tpu_custom_call.1} parent=11 // pred_fallthru
          _
      $region12: #{tpu_custom_call.1} parent=5 // pred_fallthru
        _
      %p230 = scmp.lt.s32.totalorder %s19, 2
      // Predicated region
      $region37: #{tpu_custom_call.1} parent=5 // pred_check
        %p231 = pneg %p230
      $region38: #{tpu_custom_call.1} parent=5 // pred_check_branch
        %233 = sbr.rel (%p231) target = $region40
      $region39: #{tpu_custom_call.1} parent=5 // pred_region
        // Predicated region
        $region41: #{tpu_custom_call.1} parent=39 // pred_check
          %p234 = pneg %p39
        $region42: #{tpu_custom_call.1} parent=39 // pred_check_branch
          %236 = sbr.rel (%p234) target = $region44
        $region43: #{tpu_custom_call.1} parent=39 // pred_region
          %s237 = sand.u32 %s29, 1
          %s238 = scalar_lea.sflag [#allocation3], %s237
          %s239 = sand.u32 %s29, 1
          %s240 = smul.addr %s239, 80
          %s241 = scalar_lea.vmem [#allocation2], %s240
          %s242 = smul.u32 2, %s19
          %s244 = ssub.s32 1280, 1280
          %245 = vsyncadd %s238, %s244
          %s246 = smul.addr %s242, 128
          %s247 = scalar_lea.hbm %s0, %s246
          %s248 = sshll.u32 %s241, 4
          %s249 = int_to_ptr.vmem [resolvable:$true] %s248
          %254 = dma.hbm_to_vmem [thread:$0]  %s247, 1280, %s249, %s238, 512, 256, 16
        $region44: #{tpu_custom_call.1} parent=39 // pred_fallthru
          _
      $region40: #{tpu_custom_call.1} parent=5 // pred_fallthru
        _
      %p255 = scmp.le.s32.totalorder 1, %s19
      %p256 = scmp.lt.s32.totalorder %s19, 3
      %p257 = pnand %p255, %p256
      %p258 = pneg %p257
      // Predicated region
      $region45: #{tpu_custom_call.1} parent=5 // pred_check
        _
      $region46: #{tpu_custom_call.1} parent=5 // pred_check_branch
        %260 = sbr.rel (%p257) target = $region48
      $region47: #{tpu_custom_call.1} parent=5 // pred_region
        %s261 = ssub.s32 %s19, 1
        %s262 = sand.u32 %s32, 1
        %s263 = scalar_lea.sflag [#allocation3], %s262
        %s264 = sand.u32 %s32, 1
        %s265 = smul.addr %s264, 80
        %s266 = scalar_lea.vmem [#allocation2], %s265
        // Predicated region
        $region49: #{tpu_custom_call.1} parent=47 // pred_check
          %p267 = pneg %p45
        $region50: #{tpu_custom_call.1} parent=47 // pred_check_branch
          %269 = sbr.rel (%p267) target = $region52
        $region51: #{tpu_custom_call.1} parent=47 // pred_region
          %270 = dma.done %s263, 1280
        $region52: #{tpu_custom_call.1} parent=47 // pred_fallthru
          _
        %s271 = sand.u32 %s32, 1
        %s272 = scalar_lea.sflag [#allocation3], %s271
        %s273 = sand.u32 %s32, 1
        %s274 = smul.addr %s273, 80
        %s275 = scalar_lea.vmem [#allocation2], %s274
        %p276 = pneg %p45
        %p277 = pneg %p42
        %p278 = pneg %p66
        %p279 = pneg %p63
        %p280 = pneg %p87
        %p281 = pneg %p84
        %p282 = pneg %p108
        %p283 = pneg %p105
        %p284 = pneg %p129
        %p285 = pneg %p126
        %p286 = pneg %p150
        %p287 = pneg %p147
        %p288 = pneg %p171
        %p289 = pneg %p168
        %p290 = pneg %p197
        %p291 = pneg %p194
        %s292 = sand.u32 %s184, 1
        %s293 = scalar_lea.sflag [#allocation4], %s292
        %s294 = sand.u32 %s184, 1
        %s295 = smul.addr %s294, 32
        %s296 = scalar_lea.vmem [#allocation5], %s295
        %s297 = smul.u32 2, %s24
        %s298 = smul.u32 2, %s24
        %v299 = vld [vmem:[%s266] sm:$0xff]
        %v300 = vld [vmem:[%s266 + $0x8] sm:$0xff]
        %v301 = vld [vmem:[%s266 + $0x10] sm:$0xff]
        %v302 = vld [vmem:[%s266 + $0x18] sm:$0xff]
        %v303 = vld [vmem:[%s266 + $0x20] sm:$0xff]
        %v304 = vld [vmem:[%s266 + $0x28] sm:$0xff]
        %v305 = vld [vmem:[%s266 + $0x30] sm:$0xff]
        %v306 = vld [vmem:[%s266 + $0x38] sm:$0xff]
        %v307 = vld [vmem:[%s266 + $0x40] sm:$0xff]
        %v308 = vld [vmem:[%s266 + $0x48] sm:$0xff]
        %v309 = vld [vmem:[%s1] sm:$0xff]
        %v310 = vld [vmem:[%s1 + $0x8] sm:$0xff]
        %v311 = vld [vmem:[%s1 + $0x10] sm:$0xff]
        %v312 = vld [vmem:[%s1 + $0x18] sm:$0xff]
        %v313 = vld [vmem:[%s2] sm:$0xff]
        %v314 = vld [vmem:[%s2 + $0x8] sm:$0xff]
        %v315 = vld [vmem:[%s2 + $0x10] sm:$0xff]
        %v316 = vld [vmem:[%s2 + $0x18] sm:$0xff]
        %318 = vset.pattern.permute.xlu0 0
        %319 = vperm.xlu0 %318, %v313
        %v320 = vpop.permute.xlu0 %319
        %323 = vset.pattern.permute.xlu0 0
        %324 = vperm.xlu0 %323, %v314
        %v325 = vpop.permute.xlu0 %324
        %328 = vset.pattern.permute.xlu0 0
        %329 = vperm.xlu0 %328, %v315
        %v330 = vpop.permute.xlu0 %329
        %333 = vset.pattern.permute.xlu0 0
        %334 = vperm.xlu0 %333, %v316
        %v335 = vpop.permute.xlu0 %334
        %vm337 = vcmask 326656
        %v339 = vsel %vm337, %v309, 0
        %v342 = vsel %vm337, %v310, 0
        %v345 = vsel %vm337, %v311, 0
        %v348 = vsel %vm337, %v312, 0
        %350 = vmatprep.subr.mxu0 0.0
        %351 = vmatpush1.msra.mxu0 0.0
        %352 = vmatprep.subr.mxu0 0.0
        %353 = vmatpush1.msra.mxu0 0.0
        %354 = vmatprep.subr.mxu0 0.0
        %355 = vmatpush1.msra.mxu0 0.0
        %356 = vmatprep.subr.mxu0 0.0
        %357 = vmatpush1.msra.mxu0 0.0
        %358 = vmatprep.subr.mxu0 0.0
        %359 = vmatpush1.msra.mxu0 0.0
        %360 = vmatprep.subr.mxu0 0.0
        %361 = vmatpush1.msra.mxu0 0.0
        %362 = vmatprep.subr.mxu0 0.0
        %363 = vmatpush1.msra.mxu0 0.0
        %364 = vmatprep.subr.mxu0 0.0
        %365 = vmatpush1.msra.mxu0 0.0
        %366 = vmatprep.subr.mxu0 0.0
        %367 = vmatpush1.msra.mxu0 0.0
        %368 = vmatprep.subr.mxu0 0.0
        %369 = vmatpush1.msra.mxu0 0.0
        %370 = vmatprep.subr.mxu0 0.0
        %371 = vmatpush1.msra.mxu0 0.0
        %372 = vmatprep.subr.mxu0 %v308
        %373 = vmatpush1.msra.mxu0 %v307
        %374 = vmatprep.subr.mxu0 %v306
        %375 = vmatpush1.msra.mxu0 %v305
        %376 = vmatprep.subr.mxu0 %v304
        %377 = vmatpush1.msra.mxu0 %v303
        %378 = vmatprep.subr.mxu0 %v302
        %379 = vmatpush1.msra.mxu0 %v301
        %380 = vmatprep.subr.mxu0 %v300
        %381 = vmatpush1.msra.mxu0 %v299
        %382 = vmatprep.subr.mxu0 0.0
        %383 = vmatpush2.msra.mxu0 0.0
        %384 = vmatprep.subr.mxu0 0.0
        %385 = vmatpush2.msra.mxu0 0.0
        %386 = vmatprep.subr.mxu0 0.0
        %387 = vmatpush2.msra.mxu0 0.0
        %388 = vmatprep.subr.mxu0 0.0
        %389 = vmatpush2.msra.mxu0 0.0
        %390 = vmatprep.subr.mxu0 0.0
        %391 = vmatpush2.msra.mxu0 0.0
        %392 = vmatprep.subr.mxu0 0.0
        %393 = vmatpush2.msra.mxu0 0.0
        %394 = vmatprep.subr.mxu0 0.0
        %395 = vmatpush2.msra.mxu0 0.0
        %396 = vmatprep.subr.mxu0 0.0
        %397 = vmatpush2.msra.mxu0 0.0
        %398 = vmatprep.subr.mxu0 0.0
        %399 = vmatpush2.msra.mxu0 0.0
        %400 = vmatprep.subr.mxu0 0.0
        %401 = vmatpush2.msra.mxu0 0.0
        %402 = vmatprep.subr.mxu0 0.0
        %403 = vmatpush2.msra.mxu0 0.0
        %404 = vmatprep.subr.mxu0 0.0
        %405 = vmatpush2.msra.mxu0 0.0
        %406 = vmatprep.subr.mxu0 0.0
        %407 = vmatpush2.msra.mxu0 0.0
        %408 = vmatprep.subr.mxu0 0.0
        %409 = vmatpush2.msra.mxu0 0.0
        %410 = vmatprep.subr.mxu0 0.0
        %411 = vmatpush2.msra.mxu0 0.0
        %412 = vmatprep.subr.mxu0 0.0
        %413 = vmatpush2.msra.mxu0 0.0
        %414 = vmatprep.mubr.f32.mxu0 0.0
        %415 = vmatmul.mubr.f32.gmra.mxu0 %v339
        %v416 = vpop.f32.mrf.mxu0
        %v417 = vadd.f32 %v320, %v416
        %v418 = vpop.f32.mrf.mxu0
        %v419 = vadd.f32 %v320, %v418
        %420 = vmatprep.mubr.f32.mxu0 0.0
        %421 = vmatmul.mubr.f32.gmra.mxu0 %v342
        %v422 = vpop.f32.mrf.mxu0
        %v423 = vadd.f32 %v325, %v422
        %v424 = vpop.f32.mrf.mxu0
        %v425 = vadd.f32 %v325, %v424
        %426 = vmatprep.mubr.f32.mxu0 0.0
        %427 = vmatmul.mubr.f32.gmra.mxu0 %v345
        %v428 = vpop.f32.mrf.mxu0
        %v429 = vadd.f32 %v330, %v428
        %v430 = vpop.f32.mrf.mxu0
        %v431 = vadd.f32 %v330, %v430
        %432 = vmatprep.mubr.f32.mxu0 0.0
        %433 = vmatmul.mubr.f32.gmra.mxu0 %v348
        %v434 = vpop.f32.mrf.mxu0
        %v435 = vadd.f32 %v335, %v434
        %v436 = vpop.f32.mrf.mxu0
        %v437 = vadd.f32 %v335, %v436
        %438 = vdwg.mxu0
        %v439 = vmax.f32 %v417, 0.0
        %v440 = vmax.f32 %v419, 0.0
        %v441 = vmax.f32 %v423, 0.0
        %v442 = vmax.f32 %v425, 0.0
        %v443 = vmax.f32 %v429, 0.0
        %v444 = vmax.f32 %v431, 0.0
        %v445 = vmax.f32 %v435, 0.0
        %v446 = vmax.f32 %v437, 0.0
        %v447 = vld [vmem:[%s3] sm:$0xff]
        %v448 = vld [vmem:[%s3 + $0x8] sm:$0xff]
        %v449 = vld [vmem:[%s3 + $0x10] sm:$0xff]
        %v450 = vld [vmem:[%s3 + $0x18] sm:$0xff]
        %v451 = vld [vmem:[%s4] sm:$0xff]
        %v452 = vld [vmem:[%s4 + $0x8] sm:$0xff]
        %v453 = vld [vmem:[%s4 + $0x10] sm:$0xff]
        %v454 = vld [vmem:[%s4 + $0x18] sm:$0xff]
        %456 = vset.pattern.permute.xlu0 0
        %457 = vperm.xlu0 %456, %v451
        %v458 = vpop.permute.xlu0 %457
        %461 = vset.pattern.permute.xlu0 0
        %462 = vperm.xlu0 %461, %v452
        %v463 = vpop.permute.xlu0 %462
        %466 = vset.pattern.permute.xlu0 0
        %467 = vperm.xlu0 %466, %v453
        %v468 = vpop.permute.xlu0 %467
        %471 = vset.pattern.permute.xlu0 0
        %472 = vperm.xlu0 %471, %v454
        %v473 = vpop.permute.xlu0 %472
        %vm475 = vcmask 261120
        %v477 = vsel %vm475, %v447, 0
        %v480 = vsel %vm475, %v448, 0
        %v483 = vsel %vm475, %v449, 0
        %v486 = vsel %vm475, %v450, 0
        %488 = vmatprep.subr.mxu0 0.0
        %489 = vmatpush1.msra.mxu0 0.0
        %490 = vmatprep.subr.mxu0 0.0
        %491 = vmatpush1.msra.mxu0 0.0
        %492 = vmatprep.subr.mxu0 0.0
        %493 = vmatpush1.msra.mxu0 0.0
        %494 = vmatprep.subr.mxu0 0.0
        %495 = vmatpush1.msra.mxu0 0.0
        %496 = vmatprep.subr.mxu0 0.0
        %497 = vmatpush1.msra.mxu0 0.0
        %498 = vmatprep.subr.mxu0 0.0
        %499 = vmatpush1.msra.mxu0 0.0
        %500 = vmatprep.subr.mxu0 0.0
        %501 = vmatpush1.msra.mxu0 0.0
        %502 = vmatprep.subr.mxu0 0.0
        %503 = vmatpush1.msra.mxu0 0.0
        %504 = vmatprep.subr.mxu0 0.0
        %505 = vmatpush1.msra.mxu0 0.0
        %506 = vmatprep.subr.mxu0 0.0
        %507 = vmatpush1.msra.mxu0 0.0
        %508 = vmatprep.subr.mxu0 0.0
        %509 = vmatpush1.msra.mxu0 0.0
        %510 = vmatprep.subr.mxu0 0.0
        %511 = vmatpush1.msra.mxu0 0.0
        %512 = vmatprep.subr.mxu0 %v446
        %513 = vmatpush1.msra.mxu0 %v445
        %514 = vmatprep.subr.mxu0 %v444
        %515 = vmatpush1.msra.mxu0 %v443
        %516 = vmatprep.subr.mxu0 %v442
        %517 = vmatpush1.msra.mxu0 %v441
        %518 = vmatprep.subr.mxu0 %v440
        %519 = vmatpush1.msra.mxu0 %v439
        %520 = vmatprep.subr.mxu0 0.0
        %521 = vmatpush2.msra.mxu0 0.0
        %522 = vmatprep.subr.mxu0 0.0
        %523 = vmatpush2.msra.mxu0 0.0
        %524 = vmatprep.subr.mxu0 0.0
        %525 = vmatpush2.msra.mxu0 0.0
        %526 = vmatprep.subr.mxu0 0.0
        %527 = vmatpush2.msra.mxu0 0.0
        %528 = vmatprep.subr.mxu0 0.0
        %529 = vmatpush2.msra.mxu0 0.0
        %530 = vmatprep.subr.mxu0 0.0
        %531 = vmatpush2.msra.mxu0 0.0
        %532 = vmatprep.subr.mxu0 0.0
        %533 = vmatpush2.msra.mxu0 0.0
        %534 = vmatprep.subr.mxu0 0.0
        %535 = vmatpush2.msra.mxu0 0.0
        %536 = vmatprep.subr.mxu0 0.0
        %537 = vmatpush2.msra.mxu0 0.0
        %538 = vmatprep.subr.mxu0 0.0
        %539 = vmatpush2.msra.mxu0 0.0
        %540 = vmatprep.subr.mxu0 0.0
        %541 = vmatpush2.msra.mxu0 0.0
        %542 = vmatprep.subr.mxu0 0.0
        %543 = vmatpush2.msra.mxu0 0.0
        %544 = vmatprep.subr.mxu0 0.0
        %545 = vmatpush2.msra.mxu0 0.0
        %546 = vmatprep.subr.mxu0 0.0
        %547 = vmatpush2.msra.mxu0 0.0
        %548 = vmatprep.subr.mxu0 0.0
        %549 = vmatpush2.msra.mxu0 0.0
        %550 = vmatprep.subr.mxu0 0.0
        %551 = vmatpush2.msra.mxu0 0.0
        %552 = vmatprep.mubr.f32.mxu0 0.0
        %553 = vmatmul.mubr.f32.gmra.mxu0 %v477
        %v554 = vpop.f32.mrf.mxu0
        %v555 = vadd.f32 %v458, %v554
        %v556 = vpop.f32.mrf.mxu0
        %v557 = vadd.f32 %v458, %v556
        %558 = vmatprep.mubr.f32.mxu0 0.0
        %559 = vmatmul.mubr.f32.gmra.mxu0 %v480
        %v560 = vpop.f32.mrf.mxu0
        %v561 = vadd.f32 %v463, %v560
        %v562 = vpop.f32.mrf.mxu0
        %v563 = vadd.f32 %v463, %v562
        %564 = vmatprep.mubr.f32.mxu0 0.0
        %565 = vmatmul.mubr.f32.gmra.mxu0 %v483
        %v566 = vpop.f32.mrf.mxu0
        %v567 = vadd.f32 %v468, %v566
        %v568 = vpop.f32.mrf.mxu0
        %v569 = vadd.f32 %v468, %v568
        %570 = vmatprep.mubr.f32.mxu0 0.0
        %571 = vmatmul.mubr.f32.gmra.mxu0 %v486
        %v572 = vpop.f32.mrf.mxu0
        %v573 = vadd.f32 %v473, %v572
        %v574 = vpop.f32.mrf.mxu0
        %v575 = vadd.f32 %v473, %v574
        %576 = vdwg.mxu0
        %v577 = vmax.f32 %v555, 0.0
        %v578 = vmax.f32 %v557, 0.0
        %v579 = vmax.f32 %v561, 0.0
        %v580 = vmax.f32 %v563, 0.0
        %v581 = vmax.f32 %v567, 0.0
        %v582 = vmax.f32 %v569, 0.0
        %v583 = vmax.f32 %v573, 0.0
        %v584 = vmax.f32 %v575, 0.0
        %v585 = vld [vmem:[%s5] sm:$0xff]
        %v586 = vld [vmem:[%s5 + $0x8] sm:$0x1]
        %v587 = vld [vmem:[%s6] sm:$0xff]
        %v588 = vld [vmem:[%s6 + $0x8] sm:$0x1]
        %590 = vset.pattern.permute.xlu0 0
        %591 = vperm.xlu0 %590, %v587
        %v592 = vpop.permute.xlu0 %591
        %595 = vset.pattern.permute.xlu0 0
        %596 = vperm.xlu0 %595, %v588
        %v597 = vpop.permute.xlu0 %596
        %v600 = vsel %vm475, %v585, 0
        %v603 = vsel %vm475, %v586, 0
        %605 = vmatprep.subr.mxu0 0.0
        %606 = vmatpush1.msra.mxu0 0.0
        %607 = vmatprep.subr.mxu0 0.0
        %608 = vmatpush1.msra.mxu0 0.0
        %609 = vmatprep.subr.mxu0 0.0
        %610 = vmatpush1.msra.mxu0 0.0
        %611 = vmatprep.subr.mxu0 0.0
        %612 = vmatpush1.msra.mxu0 0.0
        %613 = vmatprep.subr.mxu0 0.0
        %614 = vmatpush1.msra.mxu0 0.0
        %615 = vmatprep.subr.mxu0 0.0
        %616 = vmatpush1.msra.mxu0 0.0
        %617 = vmatprep.subr.mxu0 0.0
        %618 = vmatpush1.msra.mxu0 0.0
        %619 = vmatprep.subr.mxu0 0.0
        %620 = vmatpush1.msra.mxu0 0.0
        %621 = vmatprep.subr.mxu0 0.0
        %622 = vmatpush1.msra.mxu0 0.0
        %623 = vmatprep.subr.mxu0 0.0
        %624 = vmatpush1.msra.mxu0 0.0
        %625 = vmatprep.subr.mxu0 0.0
        %626 = vmatpush1.msra.mxu0 0.0
        %627 = vmatprep.subr.mxu0 0.0
        %628 = vmatpush1.msra.mxu0 0.0
        %629 = vmatprep.subr.mxu0 %v584
        %630 = vmatpush1.msra.mxu0 %v583
        %631 = vmatprep.subr.mxu0 %v582
        %632 = vmatpush1.msra.mxu0 %v581
        %633 = vmatprep.subr.mxu0 %v580
        %634 = vmatpush1.msra.mxu0 %v579
        %635 = vmatprep.subr.mxu0 %v578
        %636 = vmatpush1.msra.mxu0 %v577
        %637 = vmatprep.subr.mxu0 0.0
        %638 = vmatpush2.msra.mxu0 0.0
        %639 = vmatprep.subr.mxu0 0.0
        %640 = vmatpush2.msra.mxu0 0.0
        %641 = vmatprep.subr.mxu0 0.0
        %642 = vmatpush2.msra.mxu0 0.0
        %643 = vmatprep.subr.mxu0 0.0
        %644 = vmatpush2.msra.mxu0 0.0
        %645 = vmatprep.subr.mxu0 0.0
        %646 = vmatpush2.msra.mxu0 0.0
        %647 = vmatprep.subr.mxu0 0.0
        %648 = vmatpush2.msra.mxu0 0.0
        %649 = vmatprep.subr.mxu0 0.0
        %650 = vmatpush2.msra.mxu0 0.0
        %651 = vmatprep.subr.mxu0 0.0
        %652 = vmatpush2.msra.mxu0 0.0
        %653 = vmatprep.subr.mxu0 0.0
        %654 = vmatpush2.msra.mxu0 0.0
        %655 = vmatprep.subr.mxu0 0.0
        %656 = vmatpush2.msra.mxu0 0.0
        %657 = vmatprep.subr.mxu0 0.0
        %658 = vmatpush2.msra.mxu0 0.0
        %659 = vmatprep.subr.mxu0 0.0
        %660 = vmatpush2.msra.mxu0 0.0
        %661 = vmatprep.subr.mxu0 0.0
        %662 = vmatpush2.msra.mxu0 0.0
        %663 = vmatprep.subr.mxu0 0.0
        %664 = vmatpush2.msra.mxu0 0.0
        %665 = vmatprep.subr.mxu0 0.0
        %666 = vmatpush2.msra.mxu0 0.0
        %667 = vmatprep.subr.mxu0 0.0
        %668 = vmatpush2.msra.mxu0 0.0
        %669 = vmatprep.mubr.f32.mxu0 0.0
        %670 = vmatmul.mubr.f32.gmra.mxu0 %v600
        %v671 = vpop.f32.mrf.mxu0
        %v672 = vadd.f32 %v592, %v671
        %v673 = vpop.f32.mrf.mxu0
        %v674 = vadd.f32 %v592, %v673
        %675 = vmatprep.mubr.f32.mxu0 0.0
        %676 = vmatmul.mubr.f32.gmra.mxu0 %v603
        %v677 = vpop.f32.mrf.mxu0
        %v678 = vadd.f32 %v597, %v677
        %v679 = vpop.f32.mrf.mxu0
        %v680 = vadd.f32 %v597, %v679
        %681 = vdwg.mxu0
        %v682 = vmax.f32 %v672, 0.0
        %v683 = vmax.f32 %v674, 0.0
        %v684 = vmax.f32 %v678, 0.0
        %v685 = vmax.f32 %v680, 0.0
        %v686 = vlaneseq
        %v687 = vshrl.u32 %v686, 7
        %v688 = vsub.s32 4, %v687
        %v689 = vrot.slane %v305, %v688
        %v690 = vlaneseq
        %v691 = vshrl.u32 %v690, 7
        %v692 = vsub.s32 4, %v691
        %v693 = vrot.slane %v306, %v692
        %v694 = vadd.f32 %v682, %v689
        %v695 = vadd.f32 %v683, %v693
        %v696 = vadd.f32 %v684, %v689
        %v697 = vadd.f32 %v685, %v693
        %698 = vst [vmem:[%s296] sm:$0xff] %v694
        %699 = vst [vmem:[%s296 + $0x8] sm:$0xff] %v695
        %700 = vst [vmem:[%s296 + $0x10] sm:$0x1] %v696
        %701 = vst [vmem:[%s296 + $0x18] sm:$0x1] %v697
        %s702 = sand.u32 %s184, 1
        %s703 = scalar_lea.sflag [#allocation4], %s702
        %s704 = sand.u32 %s184, 1
        %s705 = smul.addr %s704, 32
        %s706 = scalar_lea.vmem [#allocation5], %s705
        // Predicated region
        $region53: #{tpu_custom_call.1} parent=47 // pred_check
          %p707 = pneg %p194
        $region54: #{tpu_custom_call.1} parent=47 // pred_check_branch
          %709 = sbr.rel (%p707) target = $region56
        $region55: #{tpu_custom_call.1} parent=47 // pred_region
          %s710 = smul.u32 2, %s24
          %s712 = ssub.s32 512, 512
          %713 = vsyncadd %s703, %s712
          %s714 = smul.addr %s710, 128
          %s715 = scalar_lea.hbm %s7, %s714
          %s716 = sshll.u32 %s706, 4
          %s717 = int_to_ptr.vmem [resolvable:$true] %s716
          %722 = dma.vmem_to_hbm [thread:$0]  %s717, 512, %s715, %s703, 256, 512, 16
        $region56: #{tpu_custom_call.1} parent=47 // pred_fallthru
          _
      $region48: #{tpu_custom_call.1} parent=5 // pred_fallthru
        _
      %p723 = scmp.le.s32.totalorder 2, %s19
      // Predicated region
      $region57: #{tpu_custom_call.1} parent=5 // pred_check
        %p724 = pneg %p723
      $region58: #{tpu_custom_call.1} parent=5 // pred_check_branch
        %726 = sbr.rel (%p724) target = $region60
      $region59: #{tpu_custom_call.1} parent=5 // pred_region
        %s727 = ssub.s32 %s19, 2
        // Predicated region
        $region61: #{tpu_custom_call.1} parent=59 // pred_check
          %p728 = pneg %p200
        $region62: #{tpu_custom_call.1} parent=59 // pred_check_branch
          %730 = sbr.rel (%p728) target = $region64
        $region63: #{tpu_custom_call.1} parent=59 // pred_region
          %s731 = sand.u32 %s185, 1
          %s732 = scalar_lea.sflag [#allocation4], %s731
          %s733 = sand.u32 %s185, 1
          %s734 = smul.addr %s733, 32
          %s735 = scalar_lea.vmem [#allocation5], %s734
          %736 = dma.done %s732, 512
        $region64: #{tpu_custom_call.1} parent=59 // pred_fallthru
          _
      $region60: #{tpu_custom_call.1} parent=5 // pred_fallthru
        _
    $region6: #{tpu_custom_call.1} parent=1 // loop_footer
      %s23 = sadd.s32 1, %s19
    $region7: #{tpu_custom_call.1} parent=1 // loop_footer_branch
      %18 = sbr.rel target = $region3
    $region8: #{tpu_custom_call.1} parent=1 // loop_exit
      _
    %737 = vsyncpa [#allocation3], 1
    %s738 = scalar_lea.sflag [#allocation3], 1
    %739 = vsyncpa %s738, 1
    %740 = vsyncpa [#allocation4], 1
    %s741 = scalar_lea.sflag [#allocation4], 1
    %742 = vsyncpa %s741, 1

</llo_original>
